<compile_context>
chip_gen: v7x
topology: tpu7x:2x2x1
jax: 0.10.0
libtpu: 0.0.40
codegen_flags: <defaults>
</compile_context>

<pallas_src>
import numpy as np
import jax
import jax.numpy as jnp
from jax import lax
from jax.experimental import pallas as pl
from jax.experimental.pallas import tpu as pltpu


_K = 3                                    # conv kernel size (3x3)
_BASE_STRIDE = 8                          # finest stride (op1)
# (name, out_channels, stride) exactly as in the PyTorch __init__.
_SPECS = (("op1", 16, 8), ("op2", 32, 16), ("op3", 64, 32), ("op4", 128, 64))
_TM = 1024                                # max lane tile along the position axis


def _round_up(x, m):
    return (x + m - 1) // m * m


def _conv_mxu_kernel(w_ref, b_ref, p_ref, o_ref):
    """(Ci, 9) @ (9, tm) on the MXU, bias fused in the epilogue.

    Output tile (Ci, tm) has tm a multiple of 128 (or the 128-padded full
    array): lane-dense unmasked stores.  Tap-major patch rows are full
    128-lane vregs.  No per-tap VPU loop -> the VALU slot stays free.
    """
    o_ref[...] = (
        jnp.dot(w_ref[...], p_ref[...], preferred_element_type=jnp.float32)
        + b_ref[...]
    ).astype(o_ref.dtype)


def _choose_tile(m):
    """Pick (lane tile, padded extent) for the flattened position axis.

    * lane extents are padded to multiples of 128 (dense vregs, no tiny-matmul
      edge cases),
    * tiles are capped at 1024 lanes (max output block 128x1024 f32 = 0.5 MiB,
      trivially double-bufferable even inside v7x's 64 MiB VMEM),
    * whenever there is enough work the grid has >= 2 "parallel" steps so both
      v7x TensorCores get work; M not divisible by the tile is handled by
      zero-padding in the wrapper, never by a degenerate full-M block.
    """
    m128 = _round_up(m, 128)
    if m128 <= 256:
        return m128, m128                       # single step; too small to split
    tm = min(_TM, _round_up(m128 // 2, 128))
    return tm, _round_up(m128, tm)


def _conv_mxu(w2d, b2d, p):
    """p: tap-major patches (9, M); returns (Ci, M) = w2d @ p + b2d."""
    ci, k = w2d.shape
    m = p.shape[1]
    tm, m_pad = _choose_tile(m)
    if m_pad != m:
        p = jnp.pad(p, ((0, 0), (0, m_pad - m)))
    out = pl.pallas_call(
        _conv_mxu_kernel,
        out_shape=jax.ShapeDtypeStruct((ci, m_pad), jnp.float32),
        grid=(m_pad // tm,),
        in_specs=[
            pl.BlockSpec((ci, k), lambda i: (0, 0)),    # weights, VMEM-resident
            pl.BlockSpec((ci, 1), lambda i: (0, 0)),    # bias, VMEM-resident
            pl.BlockSpec((k, tm), lambda i: (0, i)),    # tap-major patch tile
        ],
        out_specs=pl.BlockSpec((ci, tm), lambda i: (0, i)),
        compiler_params=pltpu.CompilerParams(
            dimension_semantics=("parallel",)),         # no reduction grid axis
    )(w2d, b2d, p)
    return out[:, :m] if m_pad != m else out


def _mask_downsample_forward(x, weights, biases, padding):
    """Fused forward: x (N, 1, H, W) -> [op4, op3, op2, op1] in NCHW."""
    n, cin, h, w = x.shape
    assert cin == 1, "Mask_Downsample convs take a single input channel"
    s = _BASE_STRIDE
    ho = (h + 2 * padding - _K) // s + 1
    wo = (w + 2 * padding - _K) // s + 1

    # Blocked, tap-major im2col at stride 8, done ONCE for all four convs:
    # reshape the padded input into (ho, 8) x (wo, 8) blocks and keep the first
    # 3 offsets of each block (offsets >=3 / padded tail cells are never taps).
    xp = jnp.pad(x[:, 0], ((0, 0), (padding, padding), (padding, padding)))
    hp, wp = h + 2 * padding, w + 2 * padding
    xb = jnp.pad(xp, ((0, 0), (0, max(0, s * ho - hp)), (0, max(0, s * wo - wp))))
    xb = xb[:, : s * ho, : s * wo].reshape(n, ho, s, wo, s)
    p8 = xb[:, :, :_K, :, :_K].transpose(2, 4, 0, 1, 3)        # (3, 3, N, Ho, Wo)
    p8 = p8.reshape(_K * _K, n, ho, wo)                        # tap-major patches

    outs = {}
    for (name, cout, stride), w2d, b2d in zip(_SPECS, weights, biases):
        d = stride // s
        hi = (h + 2 * padding - _K) // stride + 1
        wi = (w + 2 * padding - _K) // stride + 1
        # stride-s output grid == ::d subset of the stride-8 grid; this holds
        # only because all four convs share K=3 and the same padding.
        assert hi == -(-ho // d) and wi == -(-wo // d), (name, hi, wi, ho, wo)
        ps = p8[:, :, ::d, ::d].reshape(_K * _K, n * hi * wi)
        y = _conv_mxu(w2d, b2d, ps)                            # (Ci, N*hi*wi)
        # Only the small per-op tensor is transposed to NCHW (no full-slab
        # NHWC->NCHW round trip).
        outs[name] = y.reshape(cout, n, hi, wi).transpose(1, 0, 2, 3)
    return [outs["op4"], outs["op3"], outs["op2"], outs["op1"]]


class MaskDownsample:
    """JAX/Pallas port of Mask_Downsample(channels, use_conv=True, dims=2, padding=1)."""

    def __init__(self, key, padding=1):
        self.padding = padding
        self.params = {}
        w2d, b2d = [], []
        for name, cout, stride in _SPECS:
            key, kw, kb = jax.random.split(key, 3)
            fan_in = 1 * _K * _K
            bound = 1.0 / np.sqrt(fan_in)          # PyTorch default uniform init
            wgt = jax.random.uniform(kw, (cout, 1, _K, _K), jnp.float32, -bound, bound)
            bia = jax.random.uniform(kb, (cout,), jnp.float32, -bound, bound)
            self.params[name] = (wgt, bia, stride)
            w2d.append(wgt.reshape(cout, _K * _K))   # (Ci, 9), (ki, kj) row-major
            b2d.append(bia.reshape(cout, 1))
        self.w2d = tuple(w2d)
        self.b2d = tuple(b2d)
        self._forward = jax.jit(_mask_downsample_forward, static_argnums=(3,))

    def __call__(self, x):
        # Matches forward(): returns [op4(x), op3(x), op2(x), op1(x)].
        return self._forward(x, self.w2d, self.b2d, self.padding)


def _reference_conv(x, w, b, stride, padding):
    out = lax.conv_general_dilated(
        x, w,
        window_strides=(stride, stride),
        padding=((padding, padding), (padding, padding)),
        dimension_numbers=("NCHW", "OIHW", "NCHW"),
        precision=lax.Precision.HIGHEST)
    return out + b[None, :, None, None]


def _check(model, x):
    outs = jax.block_until_ready(model(x))
    for out, (name, _, stride) in zip(outs, reversed(_SPECS)):
        wgt, bia, _ = model.params[name]
        ref = _reference_conv(x, wgt, bia, stride, model.padding)
        assert out.shape == ref.shape, (name, out.shape, ref.shape)
        # Tolerance is loose enough for MXU-pass vs XLA-conv rounding
        # differences; real tap/offset bugs show up as O(1) errors.
        np.testing.assert_allclose(np.asarray(out), np.asarray(ref),
                                   rtol=5e-3, atol=5e-3)
    return outs


if __name__ == "__main__":
    key = jax.random.PRNGKey(0)
    k_x1, k_x2, k_params = jax.random.split(key, 3)

    model = MaskDownsample(k_params, padding=1)

    # Small shape (every op is a single-step grid); op4 output is 1x1.
    x1 = jax.random.normal(k_x1, (2, 1, 64, 64), dtype=jnp.float32)
    _check(model, x1)

    # Slightly larger shape: op1's position axis (M=1250) exercises the padded,
    # two-step (2 x 640-lane) parallel grid path.
    x2 = jax.random.normal(k_x2, (2, 1, 200, 200), dtype=jnp.float32)
    _check(model, x2)

    print("KERNEL_OK")
</pallas_src>

<mosaic_0001>
module attributes {stable_mosaic.version = 11 : i64} {
  func.func @_conv_mxu_kernel(%arg0: i32, %arg1: memref<128x9xf32, #tpu.memory_space<vmem>>, %arg2: memref<128x1xf32, #tpu.memory_space<vmem>>, %arg3: memref<9x128xf32, #tpu.memory_space<vmem>>, %arg4: memref<128x128xf32, #tpu.memory_space<vmem>>) attributes {dimension_semantics = [#tpu.dimension_semantics<parallel>], iteration_bounds = array<i64: 1>, scalar_prefetch = 0 : i64, scratch_operands = 0 : i64, tpu.core_type = #tpu.core_type<tc>, window_params = [{pipeline_mode = #tpu.pipeline_mode<synchronous>, transform_indices = @transform_0, window_bounds = array<i64: 128, 9>}, {pipeline_mode = #tpu.pipeline_mode<synchronous>, transform_indices = @transform_1, window_bounds = array<i64: 128, 1>}, {transform_indices = @transform_2, window_bounds = array<i64: 9, 128>}, {transform_indices = @transform_3, window_bounds = array<i64: 128, 128>}]} {
    %c0 = arith.constant 0 : index
    %c0_0 = arith.constant 0 : index
    %0 = vector.load %arg1[%c0, %c0_0] : memref<128x9xf32, #tpu.memory_space<vmem>>, vector<128x9xf32>
    %c0_1 = arith.constant 0 : index
    %c0_2 = arith.constant 0 : index
    %1 = vector.load %arg3[%c0_1, %c0_2] : memref<9x128xf32, #tpu.memory_space<vmem>>, vector<9x128xf32>
    %cst = arith.constant dense<0.000000e+00> : vector<128x128xf32>
    %2 = tpu.matmul %0, %1, %cst {dimension_numbers = #tpu.dot_dimension_numbers<[1], [0], [0], [1], [0, 0, 1, 1], [], []>} : vector<128x9xf32>, vector<9x128xf32>, vector<128x128xf32> -> vector<128x128xf32>
    %c0_3 = arith.constant 0 : index
    %c0_4 = arith.constant 0 : index
    %3 = vector.load %arg2[%c0_3, %c0_4] : memref<128x1xf32, #tpu.memory_space<vmem>>, vector<128x1xf32>
    %4 = vector.broadcast %3 : vector<128x1xf32> to vector<128x128xf32>
    %5 = arith.addf %2, %4 : vector<128x128xf32>
    %c0_5 = arith.constant 0 : index
    %c0_6 = arith.constant 0 : index
    %6 = vector.load %arg4[%c0_5, %c0_6] : memref<128x128xf32, #tpu.memory_space<vmem>>, vector<128x128xf32>
    tpu.vector_store %arg4[%c0_5, %c0_6], %5 {strides = array<i32>} : memref<128x128xf32, #tpu.memory_space<vmem>>, vector<128x128xf32>,
    return
  }
  func.func @transform_0(%arg0: i32) -> (i32, i32) {
    %c0_i32 = arith.constant 0 : i32
    %c0_i32_0 = arith.constant 0 : i32
    %c0_i32_1 = arith.constant 0 : i32
    return %c0_i32, %c0_i32_0 : i32, i32
  }
  func.func @transform_1(%arg0: i32) -> (i32, i32) {
    %c0_i32 = arith.constant 0 : i32
    %c0_i32_0 = arith.constant 0 : i32
    %c0_i32_1 = arith.constant 0 : i32
    return %c0_i32, %c0_i32_0 : i32, i32
  }
  func.func @transform_2(%arg0: i32) -> (i32, i32) {
    %c0_i32 = arith.constant 0 : i32
    %c0_i32_0 = arith.constant 0 : i32
    return %c0_i32, %arg0 : i32, i32
  }
  func.func @transform_3(%arg0: i32) -> (i32, i32) {
    %c0_i32 = arith.constant 0 : i32
    %c0_i32_0 = arith.constant 0 : i32
    return %c0_i32, %arg0 : i32, i32
  }
}

module attributes {stable_mosaic.version = 11 : i64} {
  func.func @_conv_mxu_kernel(%arg0: i32, %arg1: memref<64x9xf32, #tpu.memory_space<vmem>>, %arg2: memref<64x1xf32, #tpu.memory_space<vmem>>, %arg3: memref<9x128xf32, #tpu.memory_space<vmem>>, %arg4: memref<64x128xf32, #tpu.memory_space<vmem>>) attributes {dimension_semantics = [#tpu.dimension_semantics<parallel>], iteration_bounds = array<i64: 1>, scalar_prefetch = 0 : i64, scratch_operands = 0 : i64, tpu.core_type = #tpu.core_type<tc>, window_params = [{pipeline_mode = #tpu.pipeline_mode<synchronous>, transform_indices = @transform_0, window_bounds = array<i64: 64, 9>}, {pipeline_mode = #tpu.pipeline_mode<synchronous>, transform_indices = @transform_1, window_bounds = array<i64: 64, 1>}, {transform_indices = @transform_2, window_bounds = array<i64: 9, 128>}, {transform_indices = @transform_3, window_bounds = array<i64: 64, 128>}]} {
    %c0 = arith.constant 0 : index
    %c0_0 = arith.constant 0 : index
    %0 = vector.load %arg1[%c0, %c0_0] : memref<64x9xf32, #tpu.memory_space<vmem>>, vector<64x9xf32>
    %c0_1 = arith.constant 0 : index
    %c0_2 = arith.constant 0 : index
    %1 = vector.load %arg3[%c0_1, %c0_2] : memref<9x128xf32, #tpu.memory_space<vmem>>, vector<9x128xf32>
    %cst = arith.constant dense<0.000000e+00> : vector<64x128xf32>
    %2 = tpu.matmul %0, %1, %cst {dimension_numbers = #tpu.dot_dimension_numbers<[1], [0], [0], [1], [0, 0, 1, 1], [], []>} : vector<64x9xf32>, vector<9x128xf32>, vector<64x128xf32> -> vector<64x128xf32>
    %c0_3 = arith.constant 0 : index
    %c0_4 = arith.constant 0 : index
    %3 = vector.load %arg2[%c0_3, %c0_4] : memref<64x1xf32, #tpu.memory_space<vmem>>, vector<64x1xf32>
    %4 = vector.broadcast %3 : vector<64x1xf32> to vector<64x128xf32>
    %5 = arith.addf %2, %4 : vector<64x128xf32>
    %c0_5 = arith.constant 0 : index
    %c0_6 = arith.constant 0 : index
    %6 = vector.load %arg4[%c0_5, %c0_6] : memref<64x128xf32, #tpu.memory_space<vmem>>, vector<64x128xf32>
    tpu.vector_store %arg4[%c0_5, %c0_6], %5 {strides = array<i32>} : memref<64x128xf32, #tpu.memory_space<vmem>>, vector<64x128xf32>,
    return
  }
  func.func @transform_0(%arg0: i32) -> (i32, i32) {
    %c0_i32 = arith.constant 0 : i32
    %c0_i32_0 = arith.constant 0 : i32
    %c0_i32_1 = arith.constant 0 : i32
    return %c0_i32, %c0_i32_0 : i32, i32
  }
  func.func @transform_1(%arg0: i32) -> (i32, i32) {
    %c0_i32 = arith.constant 0 : i32
    %c0_i32_0 = arith.constant 0 : i32
    %c0_i32_1 = arith.constant 0 : i32
    return %c0_i32, %c0_i32_0 : i32, i32
  }
  func.func @transform_2(%arg0: i32) -> (i32, i32) {
    %c0_i32 = arith.constant 0 : i32
    %c0_i32_0 = arith.constant 0 : i32
    return %c0_i32, %arg0 : i32, i32
  }
  func.func @transform_3(%arg0: i32) -> (i32, i32) {
    %c0_i32 = arith.constant 0 : i32
    %c0_i32_0 = arith.constant 0 : i32
    return %c0_i32, %arg0 : i32, i32
  }
}

module attributes {stable_mosaic.version = 11 : i64} {
  func.func @_conv_mxu_kernel(%arg0: i32, %arg1: memref<32x9xf32, #tpu.memory_space<vmem>>, %arg2: memref<32x1xf32, #tpu.memory_space<vmem>>, %arg3: memref<9x128xf32, #tpu.memory_space<vmem>>, %arg4: memref<32x128xf32, #tpu.memory_space<vmem>>) attributes {dimension_semantics = [#tpu.dimension_semantics<parallel>], iteration_bounds = array<i64: 1>, scalar_prefetch = 0 : i64, scratch_operands = 0 : i64, tpu.core_type = #tpu.core_type<tc>, window_params = [{pipeline_mode = #tpu.pipeline_mode<synchronous>, transform_indices = @transform_0, window_bounds = array<i64: 32, 9>}, {pipeline_mode = #tpu.pipeline_mode<synchronous>, transform_indices = @transform_1, window_bounds = array<i64: 32, 1>}, {transform_indices = @transform_2, window_bounds = array<i64: 9, 128>}, {transform_indices = @transform_3, window_bounds = array<i64: 32, 128>}]} {
    %c0 = arith.constant 0 : index
    %c0_0 = arith.constant 0 : index
    %0 = vector.load %arg1[%c0, %c0_0] : memref<32x9xf32, #tpu.memory_space<vmem>>, vector<32x9xf32>
    %c0_1 = arith.constant 0 : index
    %c0_2 = arith.constant 0 : index
    %1 = vector.load %arg3[%c0_1, %c0_2] : memref<9x128xf32, #tpu.memory_space<vmem>>, vector<9x128xf32>
    %cst = arith.constant dense<0.000000e+00> : vector<32x128xf32>
    %2 = tpu.matmul %0, %1, %cst {dimension_numbers = #tpu.dot_dimension_numbers<[1], [0], [0], [1], [0, 0, 1, 1], [], []>} : vector<32x9xf32>, vector<9x128xf32>, vector<32x128xf32> -> vector<32x128xf32>
    %c0_3 = arith.constant 0 : index
    %c0_4 = arith.constant 0 : index
    %3 = vector.load %arg2[%c0_3, %c0_4] : memref<32x1xf32, #tpu.memory_space<vmem>>, vector<32x1xf32>
    %4 = vector.broadcast %3 : vector<32x1xf32> to vector<32x128xf32>
    %5 = arith.addf %2, %4 : vector<32x128xf32>
    %c0_5 = arith.constant 0 : index
    %c0_6 = arith.constant 0 : index
    %6 = vector.load %arg4[%c0_5, %c0_6] : memref<32x128xf32, #tpu.memory_space<vmem>>, vector<32x128xf32>
    tpu.vector_store %arg4[%c0_5, %c0_6], %5 {strides = array<i32>} : memref<32x128xf32, #tpu.memory_space<vmem>>, vector<32x128xf32>,
    return
  }
  func.func @transform_0(%arg0: i32) -> (i32, i32) {
    %c0_i32 = arith.constant 0 : i32
    %c0_i32_0 = arith.constant 0 : i32
    %c0_i32_1 = arith.constant 0 : i32
    return %c0_i32, %c0_i32_0 : i32, i32
  }
  func.func @transform_1(%arg0: i32) -> (i32, i32) {
    %c0_i32 = arith.constant 0 : i32
    %c0_i32_0 = arith.constant 0 : i32
    %c0_i32_1 = arith.constant 0 : i32
    return %c0_i32, %c0_i32_0 : i32, i32
  }
  func.func @transform_2(%arg0: i32) -> (i32, i32) {
    %c0_i32 = arith.constant 0 : i32
    %c0_i32_0 = arith.constant 0 : i32
    return %c0_i32, %arg0 : i32, i32
  }
  func.func @transform_3(%arg0: i32) -> (i32, i32) {
    %c0_i32 = arith.constant 0 : i32
    %c0_i32_0 = arith.constant 0 : i32
    return %c0_i32, %arg0 : i32, i32
  }
}

module attributes {stable_mosaic.version = 11 : i64} {
  func.func @_conv_mxu_kernel(%arg0: i32, %arg1: memref<16x9xf32, #tpu.memory_space<vmem>>, %arg2: memref<16x1xf32, #tpu.memory_space<vmem>>, %arg3: memref<9x128xf32, #tpu.memory_space<vmem>>, %arg4: memref<16x128xf32, #tpu.memory_space<vmem>>) attributes {dimension_semantics = [#tpu.dimension_semantics<parallel>], iteration_bounds = array<i64: 1>, scalar_prefetch = 0 : i64, scratch_operands = 0 : i64, tpu.core_type = #tpu.core_type<tc>, window_params = [{pipeline_mode = #tpu.pipeline_mode<synchronous>, transform_indices = @transform_0, window_bounds = array<i64: 16, 9>}, {pipeline_mode = #tpu.pipeline_mode<synchronous>, transform_indices = @transform_1, window_bounds = array<i64: 16, 1>}, {transform_indices = @transform_2, window_bounds = array<i64: 9, 128>}, {transform_indices = @transform_3, window_bounds = array<i64: 16, 128>}]} {
    %c0 = arith.constant 0 : index
    %c0_0 = arith.constant 0 : index
    %0 = vector.load %arg1[%c0, %c0_0] : memref<16x9xf32, #tpu.memory_space<vmem>>, vector<16x9xf32>
    %c0_1 = arith.constant 0 : index
    %c0_2 = arith.constant 0 : index
    %1 = vector.load %arg3[%c0_1, %c0_2] : memref<9x128xf32, #tpu.memory_space<vmem>>, vector<9x128xf32>
    %cst = arith.constant dense<0.000000e+00> : vector<16x128xf32>
    %2 = tpu.matmul %0, %1, %cst {dimension_numbers = #tpu.dot_dimension_numbers<[1], [0], [0], [1], [0, 0, 1, 1], [], []>} : vector<16x9xf32>, vector<9x128xf32>, vector<16x128xf32> -> vector<16x128xf32>
    %c0_3 = arith.constant 0 : index
    %c0_4 = arith.constant 0 : index
    %3 = vector.load %arg2[%c0_3, %c0_4] : memref<16x1xf32, #tpu.memory_space<vmem>>, vector<16x1xf32>
    %4 = vector.broadcast %3 : vector<16x1xf32> to vector<16x128xf32>
    %5 = arith.addf %2, %4 : vector<16x128xf32>
    %c0_5 = arith.constant 0 : index
    %c0_6 = arith.constant 0 : index
    %6 = vector.load %arg4[%c0_5, %c0_6] : memref<16x128xf32, #tpu.memory_space<vmem>>, vector<16x128xf32>
    tpu.vector_store %arg4[%c0_5, %c0_6], %5 {strides = array<i32>} : memref<16x128xf32, #tpu.memory_space<vmem>>, vector<16x128xf32>,
    return
  }
  func.func @transform_0(%arg0: i32) -> (i32, i32) {
    %c0_i32 = arith.constant 0 : i32
    %c0_i32_0 = arith.constant 0 : i32
    %c0_i32_1 = arith.constant 0 : i32
    return %c0_i32, %c0_i32_0 : i32, i32
  }
  func.func @transform_1(%arg0: i32) -> (i32, i32) {
    %c0_i32 = arith.constant 0 : i32
    %c0_i32_0 = arith.constant 0 : i32
    %c0_i32_1 = arith.constant 0 : i32
    return %c0_i32, %c0_i32_0 : i32, i32
  }
  func.func @transform_2(%arg0: i32) -> (i32, i32) {
    %c0_i32 = arith.constant 0 : i32
    %c0_i32_0 = arith.constant 0 : i32
    return %c0_i32, %arg0 : i32, i32
  }
  func.func @transform_3(%arg0: i32) -> (i32, i32) {
    %c0_i32 = arith.constant 0 : i32
    %c0_i32_0 = arith.constant 0 : i32
    return %c0_i32, %arg0 : i32, i32
  }
}

</mosaic_0001>

<llo_original>
// kernel: _mask_downsample_forward.7
$region0: #{_mask_downsample_forward.7}
  #allocation0 [shape = 'u32[]', space=smem, size = 0x4, offset = 0x4, fixed_abs, tag = 'smem constant byte address 0x4 - core index']
  #allocation1 [shape = 'u32[144,128]{1,0:T(1,128)}', space=vmem, size = 0x12000, scoped, tag = 'internal scratch']
  %s0 = inlined_call_operand.vmem [shape: f32[128,9], index: 0, kind: input, shape index: {}]
  %s1 = inlined_call_operand.vmem [shape: f32[128,1], index: 1, kind: input, shape index: {}]
  %s2 = inlined_call_operand.vmem [shape: f32[9,128], index: 2, kind: input, shape index: {}]
  %s3 = inlined_call_operand.vmem [shape: f32[128,128], index: 3, kind: output, shape index: {}]
  %s4 = sld [smem:[#allocation0]]
  $region22: #{_mask_downsample_forward.7} parent=0
    _
  %s6 = ssub.s32 1, %s4
  %s7 = scalar_select 0, %s6, %s4
  // Predicated region
  $region2: #{_mask_downsample_forward.7} parent=0 // pred_check
    _
  $region3: #{_mask_downsample_forward.7} parent=0 // pred_check_branch
    %9 = sbr.rel (0) target = $region5
  $region4: #{_mask_downsample_forward.7} parent=0 // pred_region
    _
  $region5: #{_mask_downsample_forward.7} parent=0 // pred_fallthru
    _
  // Predicated region
  $region6: #{_mask_downsample_forward.7} parent=0 // pred_check
    _
  $region7: #{_mask_downsample_forward.7} parent=0 // pred_check_branch
    %11 = sbr.rel (0) target = $region9
  $region8: #{_mask_downsample_forward.7} parent=0 // pred_region
    _
  $region9: #{_mask_downsample_forward.7} parent=0 // pred_fallthru
    _
  // Predicated region
  $region10: #{_mask_downsample_forward.7} parent=0 // pred_check
    _
  $region11: #{_mask_downsample_forward.7} parent=0 // pred_check_branch
    %13 = sbr.rel (0) target = $region13
  $region12: #{_mask_downsample_forward.7} parent=0 // pred_region
    _
  $region13: #{_mask_downsample_forward.7} parent=0 // pred_fallthru
    _
  %v14 = vld [vmem:[%s0] sm:$0xff]
  %v15 = vld [vmem:[%s0 + $0x8] sm:$0xff]
  %v16 = vld [vmem:[%s0 + $0x10] sm:$0xff]
  %v17 = vld [vmem:[%s0 + $0x18] sm:$0xff]
  %v18 = vld [vmem:[%s0 + $0x20] sm:$0xff]
  %v19 = vld [vmem:[%s0 + $0x28] sm:$0xff]
  %v20 = vld [vmem:[%s0 + $0x30] sm:$0xff]
  %v21 = vld [vmem:[%s0 + $0x38] sm:$0xff]
  %v22 = vld [vmem:[%s0 + $0x40] sm:$0xff]
  %v23 = vld [vmem:[%s0 + $0x48] sm:$0xff]
  %v24 = vld [vmem:[%s0 + $0x50] sm:$0xff]
  %v25 = vld [vmem:[%s0 + $0x58] sm:$0xff]
  %v26 = vld [vmem:[%s0 + $0x60] sm:$0xff]
  %v27 = vld [vmem:[%s0 + $0x68] sm:$0xff]
  %v28 = vld [vmem:[%s0 + $0x70] sm:$0xff]
  %v29 = vld [vmem:[%s0 + $0x78] sm:$0xff]
  %v30 = vld [vmem:[%s2] sm:$0xff]
  %v31 = vld [vmem:[%s2 + $0x8] sm:$0x1]
  %v32 = vld [vmem:[%s1] sm:$0xff]
  %v33 = vld [vmem:[%s1 + $0x8] sm:$0xff]
  %v34 = vld [vmem:[%s1 + $0x10] sm:$0xff]
  %v35 = vld [vmem:[%s1 + $0x18] sm:$0xff]
  %v36 = vld [vmem:[%s1 + $0x20] sm:$0xff]
  %v37 = vld [vmem:[%s1 + $0x28] sm:$0xff]
  %v38 = vld [vmem:[%s1 + $0x30] sm:$0xff]
  %v39 = vld [vmem:[%s1 + $0x38] sm:$0xff]
  %v40 = vld [vmem:[%s1 + $0x40] sm:$0xff]
  %v41 = vld [vmem:[%s1 + $0x48] sm:$0xff]
  %v42 = vld [vmem:[%s1 + $0x50] sm:$0xff]
  %v43 = vld [vmem:[%s1 + $0x58] sm:$0xff]
  %v44 = vld [vmem:[%s1 + $0x60] sm:$0xff]
  %v45 = vld [vmem:[%s1 + $0x68] sm:$0xff]
  %v46 = vld [vmem:[%s1 + $0x70] sm:$0xff]
  %v47 = vld [vmem:[%s1 + $0x78] sm:$0xff]
  %49 = vset.pattern.permute.xlu0 0
  %50 = vperm.xlu0 %49, %v32
  %v51 = vpop.permute.xlu0 %50
  %54 = vset.pattern.permute.xlu0 0
  %55 = vperm.xlu0 %54, %v33
  %v56 = vpop.permute.xlu0 %55
  %59 = vset.pattern.permute.xlu0 0
  %60 = vperm.xlu0 %59, %v34
  %v61 = vpop.permute.xlu0 %60
  %64 = vset.pattern.permute.xlu0 0
  %65 = vperm.xlu0 %64, %v35
  %v66 = vpop.permute.xlu0 %65
  %69 = vset.pattern.permute.xlu0 0
  %70 = vperm.xlu0 %69, %v36
  %v71 = vpop.permute.xlu0 %70
  %74 = vset.pattern.permute.xlu0 0
  %75 = vperm.xlu0 %74, %v37
  %v76 = vpop.permute.xlu0 %75
  %79 = vset.pattern.permute.xlu0 0
  %80 = vperm.xlu0 %79, %v38
  %v81 = vpop.permute.xlu0 %80
  %84 = vset.pattern.permute.xlu0 0
  %85 = vperm.xlu0 %84, %v39
  %v86 = vpop.permute.xlu0 %85
  %89 = vset.pattern.permute.xlu0 0
  %90 = vperm.xlu0 %89, %v40
  %v91 = vpop.permute.xlu0 %90
  %94 = vset.pattern.permute.xlu0 0
  %95 = vperm.xlu0 %94, %v41
  %v96 = vpop.permute.xlu0 %95
  %99 = vset.pattern.permute.xlu0 0
  %100 = vperm.xlu0 %99, %v42
  %v101 = vpop.permute.xlu0 %100
  %104 = vset.pattern.permute.xlu0 0
  %105 = vperm.xlu0 %104, %v43
  %v106 = vpop.permute.xlu0 %105
  %109 = vset.pattern.permute.xlu0 0
  %110 = vperm.xlu0 %109, %v44
  %v111 = vpop.permute.xlu0 %110
  %114 = vset.pattern.permute.xlu0 0
  %115 = vperm.xlu0 %114, %v45
  %v116 = vpop.permute.xlu0 %115
  %119 = vset.pattern.permute.xlu0 0
  %120 = vperm.xlu0 %119, %v46
  %v121 = vpop.permute.xlu0 %120
  %124 = vset.pattern.permute.xlu0 0
  %125 = vperm.xlu0 %124, %v47
  %v126 = vpop.permute.xlu0 %125
  %vm128 = vcmask 72704
  %v130 = vsel %vm128, %v14, 0
  %v133 = vsel %vm128, %v15, 0
  %v136 = vsel %vm128, %v16, 0
  %v139 = vsel %vm128, %v17, 0
  %v142 = vsel %vm128, %v18, 0
  %v145 = vsel %vm128, %v19, 0
  %v148 = vsel %vm128, %v20, 0
  %v151 = vsel %vm128, %v21, 0
  %v154 = vsel %vm128, %v22, 0
  %v157 = vsel %vm128, %v23, 0
  %v160 = vsel %vm128, %v24, 0
  %v163 = vsel %vm128, %v25, 0
  %v166 = vsel %vm128, %v26, 0
  %v169 = vsel %vm128, %v27, 0
  %v172 = vsel %vm128, %v28, 0
  %v175 = vsel %vm128, %v29, 0
  %vm177 = vcmask 1040384
  %v179 = vsel %vm177, %v31, 0
  %181 = vmatprep.subr.mxu0 0.0
  %182 = vmatpush1.msra.mxu0 %v30
  %183 = vmatprep.subr.mxu0 0.0
  %184 = vmatpush1.msra.mxu0 %v179
  %185 = vmatprep.subr.mxu0 0.0
  %186 = vmatpush1.msra.mxu0 0.0
  %187 = vmatprep.subr.mxu0 0.0
  %188 = vmatpush1.msra.mxu0 0.0
  %189 = vmatprep.subr.mxu0 0.0
  %190 = vmatpush1.msra.mxu0 0.0
  %191 = vmatprep.subr.mxu0 0.0
  %192 = vmatpush1.msra.mxu0 0.0
  %193 = vmatprep.subr.mxu0 0.0
  %194 = vmatpush1.msra.mxu0 0.0
  %195 = vmatprep.subr.mxu0 0.0
  %196 = vmatpush1.msra.mxu0 0.0
  %197 = vmatprep.subr.mxu0 0.0
  %198 = vmatpush1.msra.mxu0 0.0
  %199 = vmatprep.subr.mxu0 0.0
  %200 = vmatpush1.msra.mxu0 0.0
  %201 = vmatprep.subr.mxu0 0.0
  %202 = vmatpush1.msra.mxu0 0.0
  %203 = vmatprep.subr.mxu0 0.0
  %204 = vmatpush1.msra.mxu0 0.0
  %205 = vmatprep.subr.mxu0 0.0
  %206 = vmatpush1.msra.mxu0 0.0
  %207 = vmatprep.subr.mxu0 0.0
  %208 = vmatpush1.msra.mxu0 0.0
  %209 = vmatprep.subr.mxu0 0.0
  %210 = vmatpush1.msra.mxu0 0.0
  %211 = vmatprep.subr.mxu0 0.0
  %212 = vmatpush1.msra.mxu0 0.0
  %213 = vmatprep.subr.mxu0 0.0
  %214 = vmatpush1.msra.mxu0 0.0
  %215 = vmatprep.subr.mxu0 0.0
  %216 = vmatpush1.msra.mxu0 0.0
  %217 = vmatprep.subr.mxu0 0.0
  %218 = vmatpush1.msra.mxu0 0.0
  %219 = vmatprep.subr.mxu0 0.0
  %220 = vmatpush1.msra.mxu0 0.0
  %221 = vmatprep.subr.mxu0 0.0
  %222 = vmatpush1.msra.mxu0 0.0
  %223 = vmatprep.subr.mxu0 0.0
  %224 = vmatpush1.msra.mxu0 0.0
  %225 = vmatprep.subr.mxu0 0.0
  %226 = vmatpush1.msra.mxu0 0.0
  %227 = vmatprep.subr.mxu0 0.0
  %228 = vmatpush1.msra.mxu0 0.0
  %229 = vmatprep.subr.mxu0 0.0
  %230 = vmatpush1.msra.mxu0 0.0
  %231 = vmatprep.subr.mxu0 0.0
  %232 = vmatpush1.msra.mxu0 0.0
  %233 = vmatprep.subr.mxu0 0.0
  %234 = vmatpush1.msra.mxu0 0.0
  %235 = vmatprep.subr.mxu0 0.0
  %236 = vmatpush1.msra.mxu0 0.0
  %237 = vmatprep.subr.mxu0 0.0
  %238 = vmatpush1.msra.mxu0 0.0
  %239 = vmatprep.subr.mxu0 0.0
  %240 = vmatpush1.msra.mxu0 0.0
  %241 = vmatprep.subr.mxu0 0.0
  %242 = vmatpush1.msra.mxu0 0.0
  %243 = vmatprep.subr.mxu0 0.0
  %244 = vmatpush1.msra.mxu0 0.0
  %245 = vmatprep.mubr.f32.mxu0 0.0
  %246 = vmatmul.mubr.f32.gmra.mrb[0].mxu0 %v130
  %v247 = vpop.f32.mrb[0].mxu0
  %v248 = vadd.f32 %v51, %v247
  %v249 = vpop.f32.mrb[0].mxu0
  %250 = vmatprep.mubr.f32.mxu0 0.0
  %251 = vmatmul.mubr.f32.gmra.mrb[0].mxu0 %v133
  %v252 = vpop.f32.mrb[0].mxu0
  %v253 = vadd.f32 %v56, %v252
  %v254 = vpop.f32.mrb[0].mxu0
  %255 = vmatprep.mubr.f32.mxu0 0.0
  %256 = vmatmul.mubr.f32.gmra.mrb[0].mxu0 %v136
  %v257 = vpop.f32.mrb[0].mxu0
  %v258 = vadd.f32 %v61, %v257
  %v259 = vpop.f32.mrb[0].mxu0
  %260 = vmatprep.mubr.f32.mxu0 0.0
  %261 = vmatmul.mubr.f32.gmra.mrb[0].mxu0 %v139
  %v262 = vpop.f32.mrb[0].mxu0
  %v263 = vadd.f32 %v66, %v262
  %v264 = vpop.f32.mrb[0].mxu0
  %265 = vmatprep.mubr.f32.mxu0 0.0
  %266 = vmatmul.mubr.f32.gmra.mrb[0].mxu0 %v142
  %v267 = vpop.f32.mrb[0].mxu0
  %v268 = vadd.f32 %v71, %v267
  %v269 = vpop.f32.mrb[0].mxu0
  %270 = vmatprep.mubr.f32.mxu0 0.0
  %271 = vmatmul.mubr.f32.gmra.mrb[0].mxu0 %v145
  %v272 = vpop.f32.mrb[0].mxu0
  %v273 = vadd.f32 %v76, %v272
  %v274 = vpop.f32.mrb[0].mxu0
  %275 = vmatprep.mubr.f32.mxu0 0.0
  %276 = vmatmul.mubr.f32.gmra.mrb[0].mxu0 %v148
  %v277 = vpop.f32.mrb[0].mxu0
  %v278 = vadd.f32 %v81, %v277
  %v279 = vpop.f32.mrb[0].mxu0
  %280 = vmatprep.mubr.f32.mxu0 0.0
  %281 = vmatmul.mubr.f32.gmra.mrb[0].mxu0 %v151
  %v282 = vpop.f32.mrb[0].mxu0
  %v283 = vadd.f32 %v86, %v282
  %v284 = vpop.f32.mrb[0].mxu0
  %285 = vmatprep.mubr.f32.mxu0 0.0
  %286 = vmatmul.mubr.f32.gmra.mrb[0].mxu0 %v154
  %v287 = vpop.f32.mrb[0].mxu0
  %v288 = vadd.f32 %v91, %v287
  %v289 = vpop.f32.mrb[0].mxu0
  %290 = vmatprep.mubr.f32.mxu0 0.0
  %291 = vmatmul.mubr.f32.gmra.mrb[0].mxu0 %v157
  %v292 = vpop.f32.mrb[0].mxu0
  %v293 = vadd.f32 %v96, %v292
  %v294 = vpop.f32.mrb[0].mxu0
  %295 = vmatprep.mubr.f32.mxu0 0.0
  %296 = vmatmul.mubr.f32.gmra.mrb[0].mxu0 %v160
  %v297 = vpop.f32.mrb[0].mxu0
  %v298 = vadd.f32 %v101, %v297
  %v299 = vpop.f32.mrb[0].mxu0
  %300 = vmatprep.mubr.f32.mxu0 0.0
  %301 = vmatmul.mubr.f32.gmra.mrb[0].mxu0 %v163
  %v302 = vpop.f32.mrb[0].mxu0
  %v303 = vadd.f32 %v106, %v302
  %v304 = vpop.f32.mrb[0].mxu0
  %305 = vmatprep.mubr.f32.mxu0 0.0
  %306 = vmatmul.mubr.f32.gmra.mrb[0].mxu0 %v166
  %v307 = vpop.f32.mrb[0].mxu0
  %v308 = vadd.f32 %v111, %v307
  %v309 = vpop.f32.mrb[0].mxu0
  %310 = vmatprep.mubr.f32.mxu0 0.0
  %311 = vmatmul.mubr.f32.gmra.mrb[0].mxu0 %v169
  %v312 = vpop.f32.mrb[0].mxu0
  %v313 = vadd.f32 %v116, %v312
  %v314 = vpop.f32.mrb[0].mxu0
  %315 = vmatprep.mubr.f32.mxu0 0.0
  %316 = vmatmul.mubr.f32.gmra.mrb[0].mxu0 %v172
  %v317 = vpop.f32.mrb[0].mxu0
  %v318 = vadd.f32 %v121, %v317
  %v319 = vpop.f32.mrb[0].mxu0
  %320 = vmatprep.mubr.f32.mxu0 0.0
  %321 = vmatmul.mubr.f32.gmra.mrb[0].mxu0 %v175
  %v322 = vpop.f32.mrb[0].mxu0
  %v323 = vadd.f32 %v126, %v322
  %v324 = vpop.f32.mrb[0].mxu0
  %325 = vdwg.mxu0
  %326 = vst [vmem:[%s3] sm:$0xff] %v248
  %327 = vst [vmem:[%s3 + $0x8] sm:$0xff] %v253
  %328 = vst [vmem:[%s3 + $0x10] sm:$0xff] %v258
  %329 = vst [vmem:[%s3 + $0x18] sm:$0xff] %v263
  %330 = vst [vmem:[%s3 + $0x20] sm:$0xff] %v268
  %331 = vst [vmem:[%s3 + $0x28] sm:$0xff] %v273
  %332 = vst [vmem:[%s3 + $0x30] sm:$0xff] %v278
  %333 = vst [vmem:[%s3 + $0x38] sm:$0xff] %v283
  %334 = vst [vmem:[%s3 + $0x40] sm:$0xff] %v288
  %335 = vst [vmem:[%s3 + $0x48] sm:$0xff] %v293
  %336 = vst [vmem:[%s3 + $0x50] sm:$0xff] %v298
  %337 = vst [vmem:[%s3 + $0x58] sm:$0xff] %v303
  %338 = vst [vmem:[%s3 + $0x60] sm:$0xff] %v308
  %339 = vst [vmem:[%s3 + $0x68] sm:$0xff] %v313
  %340 = vst [vmem:[%s3 + $0x70] sm:$0xff] %v318
  %341 = vst [vmem:[%s3 + $0x78] sm:$0xff] %v323
  // Predicated region
  $region14: #{_mask_downsample_forward.7} parent=0 // pred_check
    _
  $region15: #{_mask_downsample_forward.7} parent=0 // pred_check_branch
    %343 = sbr.rel (0) target = $region17
  $region16: #{_mask_downsample_forward.7} parent=0 // pred_region
    _
  $region17: #{_mask_downsample_forward.7} parent=0 // pred_fallthru
    _
  // Predicated region
  $region18: #{_mask_downsample_forward.7} parent=0 // pred_check
    _
  $region19: #{_mask_downsample_forward.7} parent=0 // pred_check_branch
    %345 = sbr.rel (0) target = $region21
  $region20: #{_mask_downsample_forward.7} parent=0 // pred_region
    _
  $region21: #{_mask_downsample_forward.7} parent=0 // pred_fallthru
    _

// kernel: _mask_downsample_forward.6
$region0: #{_mask_downsample_forward.6}
  #allocation0 [shape = 'u32[]', space=smem, size = 0x4, offset = 0x4, fixed_abs, tag = 'smem constant byte address 0x4 - core index']
  #allocation1 [shape = 'u32[144,128]{1,0:T(1,128)}', space=vmem, size = 0x12000, scoped, tag = 'internal scratch']
  %s0 = inlined_call_operand.vmem [shape: f32[64,9], index: 0, kind: input, shape index: {}]
  %s1 = inlined_call_operand.vmem [shape: f32[64,1], index: 1, kind: input, shape index: {}]
  %s2 = inlined_call_operand.vmem [shape: f32[9,128], index: 2, kind: input, shape index: {}]
  %s3 = inlined_call_operand.vmem [shape: f32[64,128], index: 3, kind: output, shape index: {}]
  %s4 = sld [smem:[#allocation0]]
  $region22: #{_mask_downsample_forward.6} parent=0
    _
  %s6 = ssub.s32 1, %s4
  %s7 = scalar_select 0, %s6, %s4
  // Predicated region
  $region2: #{_mask_downsample_forward.6} parent=0 // pred_check
    _
  $region3: #{_mask_downsample_forward.6} parent=0 // pred_check_branch
    %9 = sbr.rel (0) target = $region5
  $region4: #{_mask_downsample_forward.6} parent=0 // pred_region
    _
  $region5: #{_mask_downsample_forward.6} parent=0 // pred_fallthru
    _
  // Predicated region
  $region6: #{_mask_downsample_forward.6} parent=0 // pred_check
    _
  $region7: #{_mask_downsample_forward.6} parent=0 // pred_check_branch
    %11 = sbr.rel (0) target = $region9
  $region8: #{_mask_downsample_forward.6} parent=0 // pred_region
    _
  $region9: #{_mask_downsample_forward.6} parent=0 // pred_fallthru
    _
  // Predicated region
  $region10: #{_mask_downsample_forward.6} parent=0 // pred_check
    _
  $region11: #{_mask_downsample_forward.6} parent=0 // pred_check_branch
    %13 = sbr.rel (0) target = $region13
  $region12: #{_mask_downsample_forward.6} parent=0 // pred_region
    _
  $region13: #{_mask_downsample_forward.6} parent=0 // pred_fallthru
    _
  %v14 = vld [vmem:[%s0] sm:$0xff]
  %v15 = vld [vmem:[%s0 + $0x8] sm:$0xff]
  %v16 = vld [vmem:[%s0 + $0x10] sm:$0xff]
  %v17 = vld [vmem:[%s0 + $0x18] sm:$0xff]
  %v18 = vld [vmem:[%s0 + $0x20] sm:$0xff]
  %v19 = vld [vmem:[%s0 + $0x28] sm:$0xff]
  %v20 = vld [vmem:[%s0 + $0x30] sm:$0xff]
  %v21 = vld [vmem:[%s0 + $0x38] sm:$0xff]
  %v22 = vld [vmem:[%s2] sm:$0xff]
  %v23 = vld [vmem:[%s2 + $0x8] sm:$0x1]
  %v24 = vld [vmem:[%s1] sm:$0xff]
  %v25 = vld [vmem:[%s1 + $0x8] sm:$0xff]
  %v26 = vld [vmem:[%s1 + $0x10] sm:$0xff]
  %v27 = vld [vmem:[%s1 + $0x18] sm:$0xff]
  %v28 = vld [vmem:[%s1 + $0x20] sm:$0xff]
  %v29 = vld [vmem:[%s1 + $0x28] sm:$0xff]
  %v30 = vld [vmem:[%s1 + $0x30] sm:$0xff]
  %v31 = vld [vmem:[%s1 + $0x38] sm:$0xff]
  %33 = vset.pattern.permute.xlu0 0
  %34 = vperm.xlu0 %33, %v24
  %v35 = vpop.permute.xlu0 %34
  %38 = vset.pattern.permute.xlu0 0
  %39 = vperm.xlu0 %38, %v25
  %v40 = vpop.permute.xlu0 %39
  %43 = vset.pattern.permute.xlu0 0
  %44 = vperm.xlu0 %43, %v26
  %v45 = vpop.permute.xlu0 %44
  %48 = vset.pattern.permute.xlu0 0
  %49 = vperm.xlu0 %48, %v27
  %v50 = vpop.permute.xlu0 %49
  %53 = vset.pattern.permute.xlu0 0
  %54 = vperm.xlu0 %53, %v28
  %v55 = vpop.permute.xlu0 %54
  %58 = vset.pattern.permute.xlu0 0
  %59 = vperm.xlu0 %58, %v29
  %v60 = vpop.permute.xlu0 %59
  %63 = vset.pattern.permute.xlu0 0
  %64 = vperm.xlu0 %63, %v30
  %v65 = vpop.permute.xlu0 %64
  %68 = vset.pattern.permute.xlu0 0
  %69 = vperm.xlu0 %68, %v31
  %v70 = vpop.permute.xlu0 %69
  %vm72 = vcmask 72704
  %v74 = vsel %vm72, %v14, 0
  %v77 = vsel %vm72, %v15, 0
  %v80 = vsel %vm72, %v16, 0
  %v83 = vsel %vm72, %v17, 0
  %v86 = vsel %vm72, %v18, 0
  %v89 = vsel %vm72, %v19, 0
  %v92 = vsel %vm72, %v20, 0
  %v95 = vsel %vm72, %v21, 0
  %vm97 = vcmask 1040384
  %v99 = vsel %vm97, %v23, 0
  %101 = vmatprep.subr.mxu0 0.0
  %102 = vmatpush1.msra.mxu0 %v22
  %103 = vmatprep.subr.mxu0 0.0
  %104 = vmatpush1.msra.mxu0 %v99
  %105 = vmatprep.subr.mxu0 0.0
  %106 = vmatpush1.msra.mxu0 0.0
  %107 = vmatprep.subr.mxu0 0.0
  %108 = vmatpush1.msra.mxu0 0.0
  %109 = vmatprep.subr.mxu0 0.0
  %110 = vmatpush1.msra.mxu0 0.0
  %111 = vmatprep.subr.mxu0 0.0
  %112 = vmatpush1.msra.mxu0 0.0
  %113 = vmatprep.subr.mxu0 0.0
  %114 = vmatpush1.msra.mxu0 0.0
  %115 = vmatprep.subr.mxu0 0.0
  %116 = vmatpush1.msra.mxu0 0.0
  %117 = vmatprep.subr.mxu0 0.0
  %118 = vmatpush1.msra.mxu0 0.0
  %119 = vmatprep.subr.mxu0 0.0
  %120 = vmatpush1.msra.mxu0 0.0
  %121 = vmatprep.subr.mxu0 0.0
  %122 = vmatpush1.msra.mxu0 0.0
  %123 = vmatprep.subr.mxu0 0.0
  %124 = vmatpush1.msra.mxu0 0.0
  %125 = vmatprep.subr.mxu0 0.0
  %126 = vmatpush1.msra.mxu0 0.0
  %127 = vmatprep.subr.mxu0 0.0
  %128 = vmatpush1.msra.mxu0 0.0
  %129 = vmatprep.subr.mxu0 0.0
  %130 = vmatpush1.msra.mxu0 0.0
  %131 = vmatprep.subr.mxu0 0.0
  %132 = vmatpush1.msra.mxu0 0.0
  %133 = vmatprep.subr.mxu0 0.0
  %134 = vmatpush1.msra.mxu0 0.0
  %135 = vmatprep.subr.mxu0 0.0
  %136 = vmatpush1.msra.mxu0 0.0
  %137 = vmatprep.subr.mxu0 0.0
  %138 = vmatpush1.msra.mxu0 0.0
  %139 = vmatprep.subr.mxu0 0.0
  %140 = vmatpush1.msra.mxu0 0.0
  %141 = vmatprep.subr.mxu0 0.0
  %142 = vmatpush1.msra.mxu0 0.0
  %143 = vmatprep.subr.mxu0 0.0
  %144 = vmatpush1.msra.mxu0 0.0
  %145 = vmatprep.subr.mxu0 0.0
  %146 = vmatpush1.msra.mxu0 0.0
  %147 = vmatprep.subr.mxu0 0.0
  %148 = vmatpush1.msra.mxu0 0.0
  %149 = vmatprep.subr.mxu0 0.0
  %150 = vmatpush1.msra.mxu0 0.0
  %151 = vmatprep.subr.mxu0 0.0
  %152 = vmatpush1.msra.mxu0 0.0
  %153 = vmatprep.subr.mxu0 0.0
  %154 = vmatpush1.msra.mxu0 0.0
  %155 = vmatprep.subr.mxu0 0.0
  %156 = vmatpush1.msra.mxu0 0.0
  %157 = vmatprep.subr.mxu0 0.0
  %158 = vmatpush1.msra.mxu0 0.0
  %159 = vmatprep.subr.mxu0 0.0
  %160 = vmatpush1.msra.mxu0 0.0
  %161 = vmatprep.subr.mxu0 0.0
  %162 = vmatpush1.msra.mxu0 0.0
  %163 = vmatprep.subr.mxu0 0.0
  %164 = vmatpush1.msra.mxu0 0.0
  %165 = vmatprep.mubr.f32.mxu0 0.0
  %166 = vmatmul.mubr.f32.gmra.mrb[0].mxu0 %v74
  %v167 = vpop.f32.mrb[0].mxu0
  %v168 = vadd.f32 %v35, %v167
  %v169 = vpop.f32.mrb[0].mxu0
  %170 = vmatprep.mubr.f32.mxu0 0.0
  %171 = vmatmul.mubr.f32.gmra.mrb[0].mxu0 %v77
  %v172 = vpop.f32.mrb[0].mxu0
  %v173 = vadd.f32 %v40, %v172
  %v174 = vpop.f32.mrb[0].mxu0
  %175 = vmatprep.mubr.f32.mxu0 0.0
  %176 = vmatmul.mubr.f32.gmra.mrb[0].mxu0 %v80
  %v177 = vpop.f32.mrb[0].mxu0
  %v178 = vadd.f32 %v45, %v177
  %v179 = vpop.f32.mrb[0].mxu0
  %180 = vmatprep.mubr.f32.mxu0 0.0
  %181 = vmatmul.mubr.f32.gmra.mrb[0].mxu0 %v83
  %v182 = vpop.f32.mrb[0].mxu0
  %v183 = vadd.f32 %v50, %v182
  %v184 = vpop.f32.mrb[0].mxu0
  %185 = vmatprep.mubr.f32.mxu0 0.0
  %186 = vmatmul.mubr.f32.gmra.mrb[0].mxu0 %v86
  %v187 = vpop.f32.mrb[0].mxu0
  %v188 = vadd.f32 %v55, %v187
  %v189 = vpop.f32.mrb[0].mxu0
  %190 = vmatprep.mubr.f32.mxu0 0.0
  %191 = vmatmul.mubr.f32.gmra.mrb[0].mxu0 %v89
  %v192 = vpop.f32.mrb[0].mxu0
  %v193 = vadd.f32 %v60, %v192
  %v194 = vpop.f32.mrb[0].mxu0
  %195 = vmatprep.mubr.f32.mxu0 0.0
  %196 = vmatmul.mubr.f32.gmra.mrb[0].mxu0 %v92
  %v197 = vpop.f32.mrb[0].mxu0
  %v198 = vadd.f32 %v65, %v197
  %v199 = vpop.f32.mrb[0].mxu0
  %200 = vmatprep.mubr.f32.mxu0 0.0
  %201 = vmatmul.mubr.f32.gmra.mrb[0].mxu0 %v95
  %v202 = vpop.f32.mrb[0].mxu0
  %v203 = vadd.f32 %v70, %v202
  %v204 = vpop.f32.mrb[0].mxu0
  %205 = vdwg.mxu0
  %206 = vst [vmem:[%s3] sm:$0xff] %v168
  %207 = vst [vmem:[%s3 + $0x8] sm:$0xff] %v173
  %208 = vst [vmem:[%s3 + $0x10] sm:$0xff] %v178
  %209 = vst [vmem:[%s3 + $0x18] sm:$0xff] %v183
  %210 = vst [vmem:[%s3 + $0x20] sm:$0xff] %v188
  %211 = vst [vmem:[%s3 + $0x28] sm:$0xff] %v193
  %212 = vst [vmem:[%s3 + $0x30] sm:$0xff] %v198
  %213 = vst [vmem:[%s3 + $0x38] sm:$0xff] %v203
  // Predicated region
  $region14: #{_mask_downsample_forward.6} parent=0 // pred_check
    _
  $region15: #{_mask_downsample_forward.6} parent=0 // pred_check_branch
    %215 = sbr.rel (0) target = $region17
  $region16: #{_mask_downsample_forward.6} parent=0 // pred_region
    _
  $region17: #{_mask_downsample_forward.6} parent=0 // pred_fallthru
    _
  // Predicated region
  $region18: #{_mask_downsample_forward.6} parent=0 // pred_check
    _
  $region19: #{_mask_downsample_forward.6} parent=0 // pred_check_branch
    %217 = sbr.rel (0) target = $region21
  $region20: #{_mask_downsample_forward.6} parent=0 // pred_region
    _
  $region21: #{_mask_downsample_forward.6} parent=0 // pred_fallthru
    _

// kernel: _mask_downsample_forward.5
$region0: #{_mask_downsample_forward.5}
  #allocation0 [shape = 'u32[]', space=smem, size = 0x4, offset = 0x4, fixed_abs, tag = 'smem constant byte address 0x4 - core index']
  #allocation1 [shape = 'u32[144,128]{1,0:T(1,128)}', space=vmem, size = 0x12000, scoped, tag = 'internal scratch']
  %s0 = inlined_call_operand.vmem [shape: f32[32,9], index: 0, kind: input, shape index: {}]
  %s1 = inlined_call_operand.vmem [shape: f32[32,1], index: 1, kind: input, shape index: {}]
  %s2 = inlined_call_operand.vmem [shape: f32[9,128], index: 2, kind: input, shape index: {}]
  %s3 = inlined_call_operand.vmem [shape: f32[32,128], index: 3, kind: output, shape index: {}]
  %s4 = sld [smem:[#allocation0]]
  $region22: #{_mask_downsample_forward.5} parent=0
    _
  %s6 = ssub.s32 1, %s4
  %s7 = scalar_select 0, %s6, %s4
  // Predicated region
  $region2: #{_mask_downsample_forward.5} parent=0 // pred_check
    _
  $region3: #{_mask_downsample_forward.5} parent=0 // pred_check_branch
    %9 = sbr.rel (0) target = $region5
  $region4: #{_mask_downsample_forward.5} parent=0 // pred_region
    _
  $region5: #{_mask_downsample_forward.5} parent=0 // pred_fallthru
    _
  // Predicated region
  $region6: #{_mask_downsample_forward.5} parent=0 // pred_check
    _
  $region7: #{_mask_downsample_forward.5} parent=0 // pred_check_branch
    %11 = sbr.rel (0) target = $region9
  $region8: #{_mask_downsample_forward.5} parent=0 // pred_region
    _
  $region9: #{_mask_downsample_forward.5} parent=0 // pred_fallthru
    _
  // Predicated region
  $region10: #{_mask_downsample_forward.5} parent=0 // pred_check
    _
  $region11: #{_mask_downsample_forward.5} parent=0 // pred_check_branch
    %13 = sbr.rel (0) target = $region13
  $region12: #{_mask_downsample_forward.5} parent=0 // pred_region
    _
  $region13: #{_mask_downsample_forward.5} parent=0 // pred_fallthru
    _
  %v14 = vld [vmem:[%s0] sm:$0xff]
  %v15 = vld [vmem:[%s0 + $0x8] sm:$0xff]
  %v16 = vld [vmem:[%s0 + $0x10] sm:$0xff]
  %v17 = vld [vmem:[%s0 + $0x18] sm:$0xff]
  %v18 = vld [vmem:[%s2] sm:$0xff]
  %v19 = vld [vmem:[%s2 + $0x8] sm:$0x1]
  %v20 = vld [vmem:[%s1] sm:$0xff]
  %v21 = vld [vmem:[%s1 + $0x8] sm:$0xff]
  %v22 = vld [vmem:[%s1 + $0x10] sm:$0xff]
  %v23 = vld [vmem:[%s1 + $0x18] sm:$0xff]
  %25 = vset.pattern.permute.xlu0 0
  %26 = vperm.xlu0 %25, %v20
  %v27 = vpop.permute.xlu0 %26
  %30 = vset.pattern.permute.xlu0 0
  %31 = vperm.xlu0 %30, %v21
  %v32 = vpop.permute.xlu0 %31
  %35 = vset.pattern.permute.xlu0 0
  %36 = vperm.xlu0 %35, %v22
  %v37 = vpop.permute.xlu0 %36
  %40 = vset.pattern.permute.xlu0 0
  %41 = vperm.xlu0 %40, %v23
  %v42 = vpop.permute.xlu0 %41
  %vm44 = vcmask 72704
  %v46 = vsel %vm44, %v14, 0
  %v49 = vsel %vm44, %v15, 0
  %v52 = vsel %vm44, %v16, 0
  %v55 = vsel %vm44, %v17, 0
  %vm57 = vcmask 1040384
  %v59 = vsel %vm57, %v19, 0
  %61 = vmatprep.subr.mxu0 0.0
  %62 = vmatpush1.msra.mxu0 %v18
  %63 = vmatprep.subr.mxu0 0.0
  %64 = vmatpush1.msra.mxu0 %v59
  %65 = vmatprep.subr.mxu0 0.0
  %66 = vmatpush1.msra.mxu0 0.0
  %67 = vmatprep.subr.mxu0 0.0
  %68 = vmatpush1.msra.mxu0 0.0
  %69 = vmatprep.subr.mxu0 0.0
  %70 = vmatpush1.msra.mxu0 0.0
  %71 = vmatprep.subr.mxu0 0.0
  %72 = vmatpush1.msra.mxu0 0.0
  %73 = vmatprep.subr.mxu0 0.0
  %74 = vmatpush1.msra.mxu0 0.0
  %75 = vmatprep.subr.mxu0 0.0
  %76 = vmatpush1.msra.mxu0 0.0
  %77 = vmatprep.subr.mxu0 0.0
  %78 = vmatpush1.msra.mxu0 0.0
  %79 = vmatprep.subr.mxu0 0.0
  %80 = vmatpush1.msra.mxu0 0.0
  %81 = vmatprep.subr.mxu0 0.0
  %82 = vmatpush1.msra.mxu0 0.0
  %83 = vmatprep.subr.mxu0 0.0
  %84 = vmatpush1.msra.mxu0 0.0
  %85 = vmatprep.subr.mxu0 0.0
  %86 = vmatpush1.msra.mxu0 0.0
  %87 = vmatprep.subr.mxu0 0.0
  %88 = vmatpush1.msra.mxu0 0.0
  %89 = vmatprep.subr.mxu0 0.0
  %90 = vmatpush1.msra.mxu0 0.0
  %91 = vmatprep.subr.mxu0 0.0
  %92 = vmatpush1.msra.mxu0 0.0
  %93 = vmatprep.subr.mxu0 0.0
  %94 = vmatpush1.msra.mxu0 0.0
  %95 = vmatprep.subr.mxu0 0.0
  %96 = vmatpush1.msra.mxu0 0.0
  %97 = vmatprep.subr.mxu0 0.0
  %98 = vmatpush1.msra.mxu0 0.0
  %99 = vmatprep.subr.mxu0 0.0
  %100 = vmatpush1.msra.mxu0 0.0
  %101 = vmatprep.subr.mxu0 0.0
  %102 = vmatpush1.msra.mxu0 0.0
  %103 = vmatprep.subr.mxu0 0.0
  %104 = vmatpush1.msra.mxu0 0.0
  %105 = vmatprep.subr.mxu0 0.0
  %106 = vmatpush1.msra.mxu0 0.0
  %107 = vmatprep.subr.mxu0 0.0
  %108 = vmatpush1.msra.mxu0 0.0
  %109 = vmatprep.subr.mxu0 0.0
  %110 = vmatpush1.msra.mxu0 0.0
  %111 = vmatprep.subr.mxu0 0.0
  %112 = vmatpush1.msra.mxu0 0.0
  %113 = vmatprep.subr.mxu0 0.0
  %114 = vmatpush1.msra.mxu0 0.0
  %115 = vmatprep.subr.mxu0 0.0
  %116 = vmatpush1.msra.mxu0 0.0
  %117 = vmatprep.subr.mxu0 0.0
  %118 = vmatpush1.msra.mxu0 0.0
  %119 = vmatprep.subr.mxu0 0.0
  %120 = vmatpush1.msra.mxu0 0.0
  %121 = vmatprep.subr.mxu0 0.0
  %122 = vmatpush1.msra.mxu0 0.0
  %123 = vmatprep.subr.mxu0 0.0
  %124 = vmatpush1.msra.mxu0 0.0
  %125 = vmatprep.mubr.f32.mxu0 0.0
  %126 = vmatmul.mubr.f32.gmra.mrb[0].mxu0 %v46
  %v127 = vpop.f32.mrb[0].mxu0
  %v128 = vadd.f32 %v27, %v127
  %v129 = vpop.f32.mrb[0].mxu0
  %130 = vmatprep.mubr.f32.mxu0 0.0
  %131 = vmatmul.mubr.f32.gmra.mrb[0].mxu0 %v49
  %v132 = vpop.f32.mrb[0].mxu0
  %v133 = vadd.f32 %v32, %v132
  %v134 = vpop.f32.mrb[0].mxu0
  %135 = vmatprep.mubr.f32.mxu0 0.0
  %136 = vmatmul.mubr.f32.gmra.mrb[0].mxu0 %v52
  %v137 = vpop.f32.mrb[0].mxu0
  %v138 = vadd.f32 %v37, %v137
  %v139 = vpop.f32.mrb[0].mxu0
  %140 = vmatprep.mubr.f32.mxu0 0.0
  %141 = vmatmul.mubr.f32.gmra.mrb[0].mxu0 %v55
  %v142 = vpop.f32.mrb[0].mxu0
  %v143 = vadd.f32 %v42, %v142
  %v144 = vpop.f32.mrb[0].mxu0
  %145 = vdwg.mxu0
  %146 = vst [vmem:[%s3] sm:$0xff] %v128
  %147 = vst [vmem:[%s3 + $0x8] sm:$0xff] %v133
  %148 = vst [vmem:[%s3 + $0x10] sm:$0xff] %v138
  %149 = vst [vmem:[%s3 + $0x18] sm:$0xff] %v143
  // Predicated region
  $region14: #{_mask_downsample_forward.5} parent=0 // pred_check
    _
  $region15: #{_mask_downsample_forward.5} parent=0 // pred_check_branch
    %151 = sbr.rel (0) target = $region17
  $region16: #{_mask_downsample_forward.5} parent=0 // pred_region
    _
  $region17: #{_mask_downsample_forward.5} parent=0 // pred_fallthru
    _
  // Predicated region
  $region18: #{_mask_downsample_forward.5} parent=0 // pred_check
    _
  $region19: #{_mask_downsample_forward.5} parent=0 // pred_check_branch
    %153 = sbr.rel (0) target = $region21
  $region20: #{_mask_downsample_forward.5} parent=0 // pred_region
    _
  $region21: #{_mask_downsample_forward.5} parent=0 // pred_fallthru
    _

// kernel: _mask_downsample_forward.4
$region0: #{_mask_downsample_forward.4}
  #allocation0 [shape = 'u32[]', space=smem, size = 0x4, offset = 0x4, fixed_abs, tag = 'smem constant byte address 0x4 - core index']
  #allocation1 [shape = 'u32[144,128]{1,0:T(1,128)}', space=vmem, size = 0x12000, scoped, tag = 'internal scratch']
  %s0 = inlined_call_operand.vmem [shape: f32[16,9], index: 0, kind: input, shape index: {}]
  %s1 = inlined_call_operand.vmem [shape: f32[16,1], index: 1, kind: input, shape index: {}]
  %s2 = inlined_call_operand.vmem [shape: f32[9,128], index: 2, kind: input, shape index: {}]
  %s3 = inlined_call_operand.vmem [shape: f32[16,128], index: 3, kind: output, shape index: {}]
  %s4 = sld [smem:[#allocation0]]
  $region22: #{_mask_downsample_forward.4} parent=0
    _
  %s6 = ssub.s32 1, %s4
  %s7 = scalar_select 0, %s6, %s4
  // Predicated region
  $region2: #{_mask_downsample_forward.4} parent=0 // pred_check
    _
  $region3: #{_mask_downsample_forward.4} parent=0 // pred_check_branch
    %9 = sbr.rel (0) target = $region5
  $region4: #{_mask_downsample_forward.4} parent=0 // pred_region
    _
  $region5: #{_mask_downsample_forward.4} parent=0 // pred_fallthru
    _
  // Predicated region
  $region6: #{_mask_downsample_forward.4} parent=0 // pred_check
    _
  $region7: #{_mask_downsample_forward.4} parent=0 // pred_check_branch
    %11 = sbr.rel (0) target = $region9
  $region8: #{_mask_downsample_forward.4} parent=0 // pred_region
    _
  $region9: #{_mask_downsample_forward.4} parent=0 // pred_fallthru
    _
  // Predicated region
  $region10: #{_mask_downsample_forward.4} parent=0 // pred_check
    _
  $region11: #{_mask_downsample_forward.4} parent=0 // pred_check_branch
    %13 = sbr.rel (0) target = $region13
  $region12: #{_mask_downsample_forward.4} parent=0 // pred_region
    _
  $region13: #{_mask_downsample_forward.4} parent=0 // pred_fallthru
    _
  %v14 = vld [vmem:[%s0] sm:$0xff]
  %v15 = vld [vmem:[%s0 + $0x8] sm:$0xff]
  %v16 = vld [vmem:[%s2] sm:$0xff]
  %v17 = vld [vmem:[%s2 + $0x8] sm:$0x1]
  %v18 = vld [vmem:[%s1] sm:$0xff]
  %v19 = vld [vmem:[%s1 + $0x8] sm:$0xff]
  %21 = vset.pattern.permute.xlu0 0
  %22 = vperm.xlu0 %21, %v18
  %v23 = vpop.permute.xlu0 %22
  %26 = vset.pattern.permute.xlu0 0
  %27 = vperm.xlu0 %26, %v19
  %v28 = vpop.permute.xlu0 %27
  %vm30 = vcmask 72704
  %v32 = vsel %vm30, %v14, 0
  %v35 = vsel %vm30, %v15, 0
  %vm37 = vcmask 1040384
  %v39 = vsel %vm37, %v17, 0
  %41 = vmatprep.subr.mxu0 0.0
  %42 = vmatpush1.msra.mxu0 %v16
  %43 = vmatprep.subr.mxu0 0.0
  %44 = vmatpush1.msra.mxu0 %v39
  %45 = vmatprep.subr.mxu0 0.0
  %46 = vmatpush1.msra.mxu0 0.0
  %47 = vmatprep.subr.mxu0 0.0
  %48 = vmatpush1.msra.mxu0 0.0
  %49 = vmatprep.subr.mxu0 0.0
  %50 = vmatpush1.msra.mxu0 0.0
  %51 = vmatprep.subr.mxu0 0.0
  %52 = vmatpush1.msra.mxu0 0.0
  %53 = vmatprep.subr.mxu0 0.0
  %54 = vmatpush1.msra.mxu0 0.0
  %55 = vmatprep.subr.mxu0 0.0
  %56 = vmatpush1.msra.mxu0 0.0
  %57 = vmatprep.subr.mxu0 0.0
  %58 = vmatpush1.msra.mxu0 0.0
  %59 = vmatprep.subr.mxu0 0.0
  %60 = vmatpush1.msra.mxu0 0.0
  %61 = vmatprep.subr.mxu0 0.0
  %62 = vmatpush1.msra.mxu0 0.0
  %63 = vmatprep.subr.mxu0 0.0
  %64 = vmatpush1.msra.mxu0 0.0
  %65 = vmatprep.subr.mxu0 0.0
  %66 = vmatpush1.msra.mxu0 0.0
  %67 = vmatprep.subr.mxu0 0.0
  %68 = vmatpush1.msra.mxu0 0.0
  %69 = vmatprep.subr.mxu0 0.0
  %70 = vmatpush1.msra.mxu0 0.0
  %71 = vmatprep.subr.mxu0 0.0
  %72 = vmatpush1.msra.mxu0 0.0
  %73 = vmatprep.subr.mxu0 0.0
  %74 = vmatpush1.msra.mxu0 0.0
  %75 = vmatprep.subr.mxu0 0.0
  %76 = vmatpush1.msra.mxu0 0.0
  %77 = vmatprep.subr.mxu0 0.0
  %78 = vmatpush1.msra.mxu0 0.0
  %79 = vmatprep.subr.mxu0 0.0
  %80 = vmatpush1.msra.mxu0 0.0
  %81 = vmatprep.subr.mxu0 0.0
  %82 = vmatpush1.msra.mxu0 0.0
  %83 = vmatprep.subr.mxu0 0.0
  %84 = vmatpush1.msra.mxu0 0.0
  %85 = vmatprep.subr.mxu0 0.0
  %86 = vmatpush1.msra.mxu0 0.0
  %87 = vmatprep.subr.mxu0 0.0
  %88 = vmatpush1.msra.mxu0 0.0
  %89 = vmatprep.subr.mxu0 0.0
  %90 = vmatpush1.msra.mxu0 0.0
  %91 = vmatprep.subr.mxu0 0.0
  %92 = vmatpush1.msra.mxu0 0.0
  %93 = vmatprep.subr.mxu0 0.0
  %94 = vmatpush1.msra.mxu0 0.0
  %95 = vmatprep.subr.mxu0 0.0
  %96 = vmatpush1.msra.mxu0 0.0
  %97 = vmatprep.subr.mxu0 0.0
  %98 = vmatpush1.msra.mxu0 0.0
  %99 = vmatprep.subr.mxu0 0.0
  %100 = vmatpush1.msra.mxu0 0.0
  %101 = vmatprep.subr.mxu0 0.0
  %102 = vmatpush1.msra.mxu0 0.0
  %103 = vmatprep.subr.mxu0 0.0
  %104 = vmatpush1.msra.mxu0 0.0
  %105 = vmatprep.mubr.f32.mxu0 0.0
  %106 = vmatmul.mubr.f32.gmra.mrb[0].mxu0 %v32
  %v107 = vpop.f32.mrb[0].mxu0
  %v108 = vadd.f32 %v23, %v107
  %v109 = vpop.f32.mrb[0].mxu0
  %110 = vmatprep.mubr.f32.mxu0 0.0
  %111 = vmatmul.mubr.f32.gmra.mrb[0].mxu0 %v35
  %v112 = vpop.f32.mrb[0].mxu0
  %v113 = vadd.f32 %v28, %v112
  %v114 = vpop.f32.mrb[0].mxu0
  %115 = vdwg.mxu0
  %116 = vst [vmem:[%s3] sm:$0xff] %v108
  %117 = vst [vmem:[%s3 + $0x8] sm:$0xff] %v113
  // Predicated region
  $region14: #{_mask_downsample_forward.4} parent=0 // pred_check
    _
  $region15: #{_mask_downsample_forward.4} parent=0 // pred_check_branch
    %119 = sbr.rel (0) target = $region17
  $region16: #{_mask_downsample_forward.4} parent=0 // pred_region
    _
  $region17: #{_mask_downsample_forward.4} parent=0 // pred_fallthru
    _
  // Predicated region
  $region18: #{_mask_downsample_forward.4} parent=0 // pred_check
    _
  $region19: #{_mask_downsample_forward.4} parent=0 // pred_check_branch
    %121 = sbr.rel (0) target = $region21
  $region20: #{_mask_downsample_forward.4} parent=0 // pred_region
    _
  $region21: #{_mask_downsample_forward.4} parent=0 // pred_fallthru
    _

</llo_original>
